<compile_context>
chip_gen: v7x
topology: tpu7x:2x2x1
jax: 0.10.0
libtpu: 0.0.40
codegen_flags: <defaults>
</compile_context>

<pallas_src>
import jax
import jax.numpy as jnp
from jax import lax
from jax.experimental import pallas as pl
from jax.experimental.pallas import tpu as pltpu


def gather_kernel(idx_ref, x_ref, o_ref):
    """out[i, j] = x[i, idx[i, j]] via one-hot mask + XLU lane reduction, per row tile."""
    x = x_ref[...]                                      # (TR, N) values, loaded once
    idx = idx_ref[...]                                  # (TR, K) int32, loaded once
    TR, N = x.shape
    K = o_ref.shape[1]
    col = lax.broadcasted_iota(jnp.int32, (TR, N), 1)   # lane index per element
    for j in range(K):                                  # K is tiny -> static unroll,
        idx_j = idx[:, j:j + 1]                         #   reuses resident x vregs
        # One cmp + one select per element (scalar 0, no zeros tile), then an
        # XLU cross-lane reduce (separate issue slot from the VPU).
        picked = jnp.sum(jnp.where(col == idx_j, x, 0), axis=1, keepdims=True)
        o_ref[:, j:j + 1] = picked.astype(o_ref.dtype)


def _vmem_capacity_bytes():
    """Physical VMEM per TensorCore; conservative (v7x-sized) fallback."""
    try:
        return int(pltpu.get_tpu_info().vmem_capacity_bytes)
    except Exception:
        return 64 * 1024 * 1024


def pallas_gather_dim1(x, idx, *, max_tile_rows=4096):
    """Pallas gather along axis 1. x: (R, N), idx: (R, K) int -> (R, K)."""
    R, N = x.shape
    Rk, K = idx.shape
    assert Rk == R, "row counts must match after wrapper-side slicing"
    assert N < 2**31, "int32 index math requires N < 2**31"
    idx = idx.astype(jnp.int32)

    itemsize = jnp.dtype(x.dtype).itemsize

    # Generation-aware VMEM budget (v5e/v6e: 128 MiB physical -> ~96 MiB scoped,
    # v7x: 64 MiB physical -> ~48 MiB scoped), with headroom for compiler temps.
    capacity = _vmem_capacity_bytes()
    vmem_limit = min((capacity * 3) // 4, 96 * 1024 * 1024)
    budget = max(vmem_limit - 16 * 1024 * 1024, 8 * 1024 * 1024)

    # Resident bytes per tile row. The narrow (tr, K) idx/out blocks are
    # lane-padded to 128 lanes each; also budget the in-kernel (TR, N) iota and
    # one (TR, N) select temporary.
    n_buf = 2                                            # BlockSpec double buffering
    bytes_per_row = (n_buf * N * itemsize                # x tiles (double-buffered)
                     + n_buf * 128 * 4                   # idx tiles, lane-padded
                     + n_buf * 128 * itemsize            # out tiles, lane-padded
                     + N * 4                             # col iota temp
                     + N * itemsize)                     # select temp headroom

    # Sublane alignment is dtype-aware: 8 rows (f32/i32), 16 (bf16), 32 (i8/fp8).
    sub = 8 * max(1, 4 // itemsize)
    tr = budget // max(bytes_per_row, 1)
    tr = max(sub, min(max_tile_rows, tr))
    tr = (tr // sub) * sub
    if tr >= R:
        tr = R                                           # single full-extent block

    grid = (pl.cdiv(R, tr),)
    # TODO(synk): if an xprof trace shows per-step DMA-wait bubbles, switch the x
    # spec to pipeline_mode=pl.Buffered(3) and add the extra buffer to the budget.
    return pl.pallas_call(
        gather_kernel,
        out_shape=jax.ShapeDtypeStruct((R, K), x.dtype),
        grid=grid,
        in_specs=[
            pl.BlockSpec((tr, K), lambda i: (i, 0)),     # idx tile
            pl.BlockSpec((tr, N), lambda i: (i, 0)),     # x tile
        ],
        out_specs=pl.BlockSpec((tr, K), lambda i: (i, 0)),
        compiler_params=pltpu.CompilerParams(
            dimension_semantics=("parallel",),           # shard rows across TCs (v7x)
            vmem_limit_bytes=vmem_limit),
    )(idx, x)


def index_gather_forward(x):
    """Equivalent of IndexGather.forward: torch.gather(x, 1, [[0,0],[1,0]])."""
    idx = jnp.array([[0, 0], [1, 0]], dtype=jnp.int32)
    # torch.gather only touches the first index.shape[0] rows of x along dim 0.
    x_rows = x[: idx.shape[0]]
    # NOTE: at this module's fixed (2, N) / constant-index shape, launch + DMA
    # setup dominates and jnp.take_along_axis would be faster; the Pallas path is
    # kept so the module forward exercises the kernel.
    # TODO(synk): out-of-range indices silently yield 0 (torch.gather would raise);
    # the fixed index tensor here is always in range.
    return pallas_gather_dim1(x_rows, idx)


if __name__ == "__main__":
    key = jax.random.PRNGKey(0)

    # Small shape consistent with the module: dim0 >= 2, dim1 >= 2 (indices are 0/1).
    x = jax.random.normal(key, (2, 4), dtype=jnp.float32)
    out = jax.block_until_ready(index_gather_forward(x))

    idx = jnp.array([[0, 0], [1, 0]], dtype=jnp.int32)
    ref = jnp.take_along_axis(x[:2], idx, axis=1)
    assert out.shape == (2, 2) and out.dtype == x.dtype
    assert jnp.allclose(out, ref), (out, ref)

    # Exercise the tiled/gridded f32 path to verify pipelining at scale.
    kx, ki = jax.random.split(jax.random.PRNGKey(1))
    R2, N2, K2 = 4096, 512, 2
    xl = jax.random.normal(kx, (R2, N2), dtype=jnp.float32)
    idxl = jax.random.randint(ki, (R2, K2), 0, N2, dtype=jnp.int32)
    outl = jax.block_until_ready(pallas_gather_dim1(xl, idxl))
    refl = jnp.take_along_axis(xl, idxl, axis=1)
    assert jnp.allclose(outl, refl)

    # Exercise the dtype-aware (16-row sublane) alignment path with bf16.
    xb = jax.random.normal(kx, (R2, N2), dtype=jnp.bfloat16)
    outb = jax.block_until_ready(pallas_gather_dim1(xb, idxl))
    refb = jnp.take_along_axis(xb, idxl, axis=1)
    assert outb.dtype == jnp.bfloat16
    assert jnp.array_equal(outb, refb)   # pure selection -> exact

    print("KERNEL_OK")
</pallas_src>

<mosaic_0001>
module attributes {stable_mosaic.version = 11 : i64} {
  func.func @gather_kernel(%arg0: i32, %arg1: memref<2x2xi32, #tpu.memory_space<vmem>>, %arg2: memref<2x4xf32, #tpu.memory_space<vmem>>, %arg3: memref<2x2xf32, #tpu.memory_space<vmem>>) attributes {dimension_semantics = [#tpu.dimension_semantics<parallel>], iteration_bounds = array<i64: 1>, scalar_prefetch = 0 : i64, scratch_operands = 0 : i64, tpu.core_type = #tpu.core_type<tc>, window_params = [{transform_indices = @transform_0, window_bounds = array<i64: 2, 2>}, {transform_indices = @transform_1, window_bounds = array<i64: 2, 4>}, {transform_indices = @transform_2, window_bounds = array<i64: 2, 2>}]} {
    %c0 = arith.constant 0 : index
    %c0_0 = arith.constant 0 : index
    %0 = vector.load %arg2[%c0, %c0_0] : memref<2x4xf32, #tpu.memory_space<vmem>>, vector<2x4xf32>
    %c0_1 = arith.constant 0 : index
    %c0_2 = arith.constant 0 : index
    %1 = vector.load %arg1[%c0_1, %c0_2] : memref<2x2xi32, #tpu.memory_space<vmem>>, vector<2x2xi32>
    %2 = tpu.iota {dimensions = array<i32: 1>} : vector<2x4xi32>
    %3 = vector.extract_strided_slice %1 {offsets = [0, 0], sizes = [2, 1], strides = [1, 1]} : vector<2x2xi32> to vector<2x1xi32>
    %4 = vector.broadcast %3 : vector<2x1xi32> to vector<2x4xi32>
    %5 = arith.cmpi eq, %2, %4 : vector<2x4xi32>
    %c0_i32 = arith.constant 0 : i32
    %6 = arith.sitofp %c0_i32 : i32 to f32
    %7 = vector.broadcast %6 : f32 to vector<2x4xf32>
    %8 = arith.select %5, %0, %7 : vector<2x4xi1>, vector<2x4xf32>
    %cst = arith.constant dense<0.000000e+00> : vector<2xf32>
    %9 = vector.multi_reduction <add>, %8, %cst [1] : vector<2x4xf32> to vector<2xf32>
    %10 = vector.shape_cast %9 : vector<2xf32> to vector<2x1xf32>
    %c0_3 = arith.constant 0 : index
    %c0_4 = arith.constant 0 : index
    %11 = vector.load %arg3[%c0_3, %c0_4] : memref<2x2xf32, #tpu.memory_space<vmem>>, vector<2x1xf32>
    tpu.vector_store %arg3[%c0_3, %c0_4], %10 {strides = array<i32>} : memref<2x2xf32, #tpu.memory_space<vmem>>, vector<2x1xf32>,
    %12 = vector.extract_strided_slice %1 {offsets = [0, 1], sizes = [2, 1], strides = [1, 1]} : vector<2x2xi32> to vector<2x1xi32>
    %13 = vector.broadcast %12 : vector<2x1xi32> to vector<2x4xi32>
    %14 = arith.cmpi eq, %2, %13 : vector<2x4xi32>
    %c0_i32_5 = arith.constant 0 : i32
    %15 = arith.sitofp %c0_i32_5 : i32 to f32
    %16 = vector.broadcast %15 : f32 to vector<2x4xf32>
    %17 = arith.select %14, %0, %16 : vector<2x4xi1>, vector<2x4xf32>
    %cst_6 = arith.constant dense<0.000000e+00> : vector<2xf32>
    %18 = vector.multi_reduction <add>, %17, %cst_6 [1] : vector<2x4xf32> to vector<2xf32>
    %19 = vector.shape_cast %18 : vector<2xf32> to vector<2x1xf32>
    %c0_7 = arith.constant 0 : index
    %c1 = arith.constant 1 : index
    %20 = vector.load %arg3[%c0_7, %c1] : memref<2x2xf32, #tpu.memory_space<vmem>>, vector<2x1xf32>
    tpu.vector_store %arg3[%c0_7, %c1], %19 {strides = array<i32>} : memref<2x2xf32, #tpu.memory_space<vmem>>, vector<2x1xf32>,
    return
  }
  func.func @transform_0(%arg0: i32) -> (i32, i32) {
    %c0_i32 = arith.constant 0 : i32
    %c0_i32_0 = arith.constant 0 : i32
    return %arg0, %c0_i32 : i32, i32
  }
  func.func @transform_1(%arg0: i32) -> (i32, i32) {
    %c0_i32 = arith.constant 0 : i32
    %c0_i32_0 = arith.constant 0 : i32
    return %arg0, %c0_i32 : i32, i32
  }
  func.func @transform_2(%arg0: i32) -> (i32, i32) {
    %c0_i32 = arith.constant 0 : i32
    %c0_i32_0 = arith.constant 0 : i32
    return %arg0, %c0_i32 : i32, i32
  }
}

</mosaic_0001>

<llo_original>
// kernel: tpu_custom_call.1
$region0: #{tpu_custom_call.1}
  #allocation0 [shape = 'u32[]', space=smem, size = 0x4, offset = 0x4, fixed_abs, tag = 'smem constant byte address 0x4 - core index']
  #allocation1 [shape = 'u32[144,128]{1,0:T(1,128)}', space=vmem, size = 0x12000, scoped, tag = 'internal scratch']
  %s0 = inlined_call_operand.hbm [shape: s32[2,2], index: 0, kind: input, shape index: {}]
  %s1 = inlined_call_operand.vmem [shape: f32[2,4], index: 1, kind: input, shape index: {}]
  %s2 = inlined_call_operand.hbm [shape: f32[2,2], index: 2, kind: output, shape index: {}]
  %s3 = sld [smem:[#allocation0]]
  $region22: #{tpu_custom_call.1} parent=0
    _
  %s5 = ssub.s32 1, %s3
  %s6 = scalar_select 0, %s5, %s3
  $region1: #{tpu_custom_call.1} parent=0
    #allocation2 [shape = 'u8[1024]{0}', space=vmem, size = 0x400, scoped, tag = 'input window, operand 0, single buffered']
    #allocation3 [shape = 's32[1]{0}', space=sflag, size = 0x4, scoped, tag = 'scoped memory for tpu_custom_call.1']
    #allocation4 [shape = 's32[1]{0}', space=sflag, size = 0x4, scoped, tag = 'scoped memory for tpu_custom_call.1']
    #allocation5 [shape = 'u8[1024]{0}', space=vmem, size = 0x400, scoped, tag = 'output window, operand 0, single buffered']
    %7 = vsyncpa [#allocation3], 0
    %8 = vsyncpa [#allocation4], 0
    // Predicated region
    $region2: #{tpu_custom_call.1} parent=1 // pred_check
      _
    $region3: #{tpu_custom_call.1} parent=1 // pred_check_branch
      %10 = sbr.rel (0) target = $region5
    $region4: #{tpu_custom_call.1} parent=1 // pred_region
      %s12 = ssub.s32 32, 32
      %13 = vsyncadd [#allocation3], %s12
      %s15 = sshll.u32 [#allocation2], 4
      %s16 = int_to_ptr.vmem [resolvable:$true] %s15
      %18 = dma.hbm_to_vmem [thread:$0]  %s0, 32, %s16, [#allocation3]
    $region5: #{tpu_custom_call.1} parent=1 // pred_fallthru
      _
    // Predicated region
    $region6: #{tpu_custom_call.1} parent=1 // pred_check
      _
    $region7: #{tpu_custom_call.1} parent=1 // pred_check_branch
      %20 = sbr.rel (0) target = $region9
    $region8: #{tpu_custom_call.1} parent=1 // pred_region
      _
    $region9: #{tpu_custom_call.1} parent=1 // pred_fallthru
      _
    // Predicated region
    $region10: #{tpu_custom_call.1} parent=1 // pred_check
      _
    $region11: #{tpu_custom_call.1} parent=1 // pred_check_branch
      %22 = sbr.rel (0) target = $region13
    $region12: #{tpu_custom_call.1} parent=1 // pred_region
      %23 = dma.done [#allocation3], 32
    $region13: #{tpu_custom_call.1} parent=1 // pred_fallthru
      _
    %v24 = vld [vmem:[%s1] sm:$0x3]
    %v25 = vld [vmem:[#allocation2] sm:$0x3]
    %v26 = vlaneseq
    %v27 = vand.u32 %v26, 127
    %28 = vset.pattern.permute.xlu0 0
    %29 = vperm.xlu0 %28, %v25
    %v30 = vpop.permute.xlu0 %29
    %vm31 = vcmp.eq.s32.totalorder %v27, %v30
    %v32 = vsel %vm31, %v24, 0.0
    %vm33 = vcmask 25600
    %v34 = vsel %vm33, %v32, 0.0
    %35 = vadd.xlane.f32.xlu0 %v34
    %v36 = vpop.xlane.xlu0 %35
    %vm37 = vcmask 1024
    %38 = vst.msk [vmem:[#allocation5] sm:$0x3] %vm37, %v36
    %39 = vset.pattern.permute.xlu0 1
    %40 = vperm.xlu0 %39, %v25
    %v41 = vpop.permute.xlu0 %40
    %vm42 = vcmp.eq.s32.totalorder %v27, %v41
    %v43 = vsel %vm42, %v24, 0.0
    %v44 = vsel %vm33, %v43, 0.0
    %45 = vadd.xlane.f32.xlu0 %v44
    %v46 = vpop.xlane.xlu0 %45
    %vm47 = vcmask 9224
    %48 = vst.msk [vmem:[#allocation5] sm:$0x3] %vm47, %v46
    // Predicated region
    $region14: #{tpu_custom_call.1} parent=1 // pred_check
      _
    $region15: #{tpu_custom_call.1} parent=1 // pred_check_branch
      %50 = sbr.rel (0) target = $region17
    $region16: #{tpu_custom_call.1} parent=1 // pred_region
      %s52 = ssub.s32 32, 32
      %53 = vsyncadd [#allocation4], %s52
      %s55 = sshll.u32 [#allocation5], 4
      %s56 = int_to_ptr.vmem [resolvable:$true] %s55
      %58 = dma.vmem_to_hbm [thread:$0]  %s56, 32, %s2, [#allocation4]
    $region17: #{tpu_custom_call.1} parent=1 // pred_fallthru
      _
    // Predicated region
    $region18: #{tpu_custom_call.1} parent=1 // pred_check
      _
    $region19: #{tpu_custom_call.1} parent=1 // pred_check_branch
      %60 = sbr.rel (0) target = $region21
    $region20: #{tpu_custom_call.1} parent=1 // pred_region
      %61 = dma.done [#allocation4], 32
    $region21: #{tpu_custom_call.1} parent=1 // pred_fallthru
      _
    %62 = vsyncpa [#allocation3], 1
    %63 = vsyncpa [#allocation4], 1

</llo_original>
